<compile_context>
chip_gen: v7x
topology: tpu7x:2x2x1
jax: 0.10.0
libtpu: 0.0.40
codegen_flags: <defaults>
</compile_context>

<pallas_src>
import jax
import jax.numpy as jnp
from jax.experimental import pallas as pl
from jax.experimental.pallas import tpu as pltpu

LANE = 128          # padded hidden width (lane-dense)
HIDDEN = 64         # real hidden width of the PyTorch module


def _round_up(x, m):
    return (x + m - 1) // m * m


# ----------------------------------------------------------------------------
# Parameter packing: one contiguous (R, 128) f32 slab, row layout:
#   [0, obs_pad)          : w1  (obs_dim x 64), zero padded to (obs_pad, 128)
#   [obs_pad, +128)       : w2  (64 x 64)  padded to (128, 128)
#   [obs_pad+128, +128)   : w3  (64 x 64)  padded to (128, 128)
#   [obs_pad+256, +128)   : wq  (64 x 1)   padded to (128, 128)
#   [obs_pad+384, +8)     : bias rows b1, b2, b3, bq, zeros
# Padded rows/lanes are exactly zero, so padded activations stay zero.
# ----------------------------------------------------------------------------
def pack_params(params, obs_dim):
    obs_dim = int(obs_dim)
    obs_pad = _round_up(obs_dim, 8)

    w1_blk = jnp.zeros((obs_pad, LANE), jnp.float32)
    w1_blk = w1_blk.at[:obs_dim, :HIDDEN].set(params["w1"])

    def pad_sq(w):
        blk = jnp.zeros((LANE, LANE), jnp.float32)
        return blk.at[:w.shape[0], :w.shape[1]].set(w)

    bias = jnp.zeros((8, LANE), jnp.float32)
    bias = bias.at[0, :HIDDEN].set(params["b1"].reshape(-1))
    bias = bias.at[1, :HIDDEN].set(params["b2"].reshape(-1))
    bias = bias.at[2, :HIDDEN].set(params["b3"].reshape(-1))
    bias = bias.at[3, :params["bq"].size].set(params["bq"].reshape(-1))

    slab = jnp.concatenate(
        [w1_blk, pad_sq(params["w2"]), pad_sq(params["w3"]),
         pad_sq(params["wq"]), bias], axis=0)

    meta = dict(obs_dim=obs_dim, obs_pad=obs_pad,
                w2_off=obs_pad, w3_off=obs_pad + LANE,
                wq_off=obs_pad + 2 * LANE, bias_off=obs_pad + 3 * LANE)
    return slab, meta


# ----------------------------------------------------------------------------
# Kernel: all four layers fused; one resident weight slab; narrow q output.
# ----------------------------------------------------------------------------
def _make_critic_kernel(meta):
    obs_pad = meta["obs_pad"]
    w2_off = meta["w2_off"]
    w3_off = meta["w3_off"]
    wq_off = meta["wq_off"]
    b_off = meta["bias_off"]

    def kernel(x_ref, slab_ref, out_ref):
        b1 = slab_ref[b_off + 0:b_off + 1, :]
        b2 = slab_ref[b_off + 1:b_off + 2, :]
        b3 = slab_ref[b_off + 2:b_off + 3, :]
        bq = slab_ref[b_off + 3:b_off + 4, :]

        # fc1: single fused matmul (concat(state) @ w1) against stacked w1 rows.
        h = jnp.maximum(
            jnp.dot(x_ref[...], slab_ref[0:obs_pad, :],
                    preferred_element_type=jnp.float32) + b1, 0.0)
        # fc2 / fc3 / q_out (padded to 128 lanes; padded lanes remain 0).
        h = jnp.maximum(
            jnp.dot(h, slab_ref[w2_off:w2_off + LANE, :],
                    preferred_element_type=jnp.float32) + b2, 0.0)
        h = jnp.maximum(
            jnp.dot(h, slab_ref[w3_off:w3_off + LANE, :],
                    preferred_element_type=jnp.float32) + b3, 0.0)
        q = jnp.dot(h, slab_ref[wq_off:wq_off + LANE, :],
                    preferred_element_type=jnp.float32) + bq

        # Only lane 0 of q is the real q-value; store a narrow (TB, 1) block so
        # HBM writeback is 4 B/row instead of a 512 B/row slab.
        out_ref[...] = q[:, 0:1]

    return kernel


# ----------------------------------------------------------------------------
# Wrapper: batch grid, resident weights, (B, 1) output.
# ----------------------------------------------------------------------------
def critic_forward(state_list, slab, meta, *, block_b=2048):
    # Concatenate per-agent observations once (single small pass), so the
    # kernel runs fc1 as one MXU matmul instead of per-agent partials.
    x = state_list[0] if len(state_list) == 1 else jnp.concatenate(state_list, axis=1)
    x = x.astype(jnp.float32)
    B, obs_dim = x.shape
    assert obs_dim == meta["obs_dim"]

    obs_pad = meta["obs_pad"]
    if obs_pad != obs_dim:
        x = jnp.pad(x, ((0, 0), (0, obs_pad - obs_dim)))   # zero cols hit zero w1 rows

    # Tile choice:
    #  * large tile (<= block_b) amortises ~0.35us per-grid-step overhead
    #  * split the batch evenly over the required steps (no ~2x tail padding)
    #  * force >= 2 grid steps for large batches so both v7x TCs get work
    n_steps = max(pl.cdiv(B, block_b), 1)
    if n_steps == 1 and B > 256:
        n_steps = 2
    TB = _round_up(pl.cdiv(B, n_steps), 8)
    B_pad = _round_up(B, TB)
    if B_pad != B:
        x = jnp.pad(x, ((0, B_pad - B), (0, 0)))

    grid = (B_pad // TB,)
    R = slab.shape[0]

    in_specs = [
        pl.BlockSpec((TB, obs_pad), lambda i: (i, 0)),
        # Constant index_map -> weights stay resident in VMEM; single buffer
        # (never re-fetched) to save VMEM, which matters on v7x's 64 MiB.
        pl.BlockSpec((R, LANE), lambda i: (0, 0), pipeline_mode=pl.Buffered(1)),
    ]
    out_spec = pl.BlockSpec((TB, 1), lambda i: (i, 0))

    flops = 2 * B_pad * (obs_dim * HIDDEN + 2 * HIDDEN * HIDDEN + HIDDEN)
    bytes_accessed = 4 * (B_pad * obs_pad + int(slab.size) + B_pad)

    q = pl.pallas_call(
        _make_critic_kernel(meta),
        out_shape=jax.ShapeDtypeStruct((B_pad, 1), jnp.float32),
        grid=grid,
        in_specs=in_specs,
        out_specs=out_spec,
        compiler_params=pltpu.CompilerParams(
            dimension_semantics=("parallel",),
            vmem_limit_bytes=32 * 1024 * 1024),
        cost_estimate=pl.CostEstimate(flops=flops, transcendentals=0,
                                      bytes_accessed=bytes_accessed),
    )(x, slab)

    return q[:B]


# ----------------------------------------------------------------------------
# PyTorch-style init (nn.Linear default: uniform +-1/sqrt(fan_in)).
# ----------------------------------------------------------------------------
def init_params(key, obs_dim, hidden=HIDDEN):
    def linear(key, fan_in, fan_out):
        kw, kb = jax.random.split(key)
        bound = 1.0 / jnp.sqrt(fan_in)
        w = jax.random.uniform(kw, (fan_in, fan_out), jnp.float32, -bound, bound)
        b = jax.random.uniform(kb, (1, fan_out), jnp.float32, -bound, bound)
        return w, b

    k1, k2, k3, k4 = jax.random.split(key, 4)
    w1, b1 = linear(k1, obs_dim, hidden)
    w2, b2 = linear(k2, hidden, hidden)
    w3, b3 = linear(k3, hidden, hidden)
    wq, bq = linear(k4, hidden, 1)
    return dict(w1=w1, b1=b1, w2=w2, b2=b2, w3=w3, b3=b3, wq=wq, bq=bq)


if __name__ == "__main__":
    key = jax.random.PRNGKey(0)
    k_p, k_s1, k_s2 = jax.random.split(key, 3)

    # Two agents, each with obs dim 16 -> concatenated obs dim 32, batch 4.
    batch, obs_per_agent, n_agents = 4, 16, 2
    obs_dim = obs_per_agent * n_agents

    params = init_params(k_p, obs_dim)
    state = [
        jax.random.normal(k_s1, (batch, obs_per_agent), jnp.float32),
        jax.random.normal(k_s2, (batch, obs_per_agent), jnp.float32),
    ]

    slab, meta = pack_params(params, obs_dim)
    q = jax.block_until_ready(critic_forward(state, slab, meta))

    # Pure-JAX reference (same math as the PyTorch module).
    x = jnp.concatenate(state, axis=1)
    h = jnp.maximum(x @ params["w1"] + params["b1"], 0.0)
    h = jnp.maximum(h @ params["w2"] + params["b2"], 0.0)
    h = jnp.maximum(h @ params["w3"] + params["b3"], 0.0)
    q_ref = h @ params["wq"] + params["bq"]

    assert q.shape == (batch, 1)
    assert jnp.allclose(q, q_ref, atol=1e-5, rtol=1e-5)

    print("KERNEL_OK")
</pallas_src>

<mosaic_0001>
module attributes {stable_mosaic.version = 11 : i64} {
  func.func @kernel(%arg0: i32, %arg1: memref<8x32xf32, #tpu.memory_space<vmem>>, %arg2: memref<424x128xf32, #tpu.memory_space<vmem>>, %arg3: memref<8x1xf32, #tpu.memory_space<vmem>>) attributes {dimension_semantics = [#tpu.dimension_semantics<parallel>], iteration_bounds = array<i64: 1>, scalar_prefetch = 0 : i64, scratch_operands = 0 : i64, tpu.core_type = #tpu.core_type<tc>, window_params = [{transform_indices = @transform_0, window_bounds = array<i64: 8, 32>}, {pipeline_mode = #tpu.pipeline_mode<synchronous>, transform_indices = @transform_1, window_bounds = array<i64: 424, 128>}, {transform_indices = @transform_2, window_bounds = array<i64: 8, 1>}]} {
    %c416 = arith.constant 416 : index
    %c0 = arith.constant 0 : index
    %0 = vector.load %arg2[%c416, %c0] : memref<424x128xf32, #tpu.memory_space<vmem>>, vector<1x128xf32>
    %c417 = arith.constant 417 : index
    %c0_0 = arith.constant 0 : index
    %1 = vector.load %arg2[%c417, %c0_0] : memref<424x128xf32, #tpu.memory_space<vmem>>, vector<1x128xf32>
    %c418 = arith.constant 418 : index
    %c0_1 = arith.constant 0 : index
    %2 = vector.load %arg2[%c418, %c0_1] : memref<424x128xf32, #tpu.memory_space<vmem>>, vector<1x128xf32>
    %c419 = arith.constant 419 : index
    %c0_2 = arith.constant 0 : index
    %3 = vector.load %arg2[%c419, %c0_2] : memref<424x128xf32, #tpu.memory_space<vmem>>, vector<1x128xf32>
    %c0_3 = arith.constant 0 : index
    %c0_4 = arith.constant 0 : index
    %4 = vector.load %arg1[%c0_3, %c0_4] : memref<8x32xf32, #tpu.memory_space<vmem>>, vector<8x32xf32>
    %c0_5 = arith.constant 0 : index
    %c0_6 = arith.constant 0 : index
    %5 = vector.load %arg2[%c0_5, %c0_6] : memref<424x128xf32, #tpu.memory_space<vmem>>, vector<32x128xf32>
    %cst = arith.constant dense<0.000000e+00> : vector<8x128xf32>
    %6 = tpu.matmul %4, %5, %cst {dimension_numbers = #tpu.dot_dimension_numbers<[1], [0], [0], [1], [0, 0, 1, 1], [], []>} : vector<8x32xf32>, vector<32x128xf32>, vector<8x128xf32> -> vector<8x128xf32>
    %7 = vector.broadcast %0 : vector<1x128xf32> to vector<8x128xf32>
    %8 = arith.addf %6, %7 : vector<8x128xf32>
    %cst_7 = arith.constant 0.000000e+00 : f32
    %9 = vector.broadcast %cst_7 : f32 to vector<8x128xf32>
    %10 = arith.maximumf %8, %9 : vector<8x128xf32>
    %c32 = arith.constant 32 : index
    %c0_8 = arith.constant 0 : index
    %11 = vector.load %arg2[%c32, %c0_8] : memref<424x128xf32, #tpu.memory_space<vmem>>, vector<128x128xf32>
    %cst_9 = arith.constant dense<0.000000e+00> : vector<8x128xf32>
    %12 = tpu.matmul %10, %11, %cst_9 {dimension_numbers = #tpu.dot_dimension_numbers<[1], [0], [0], [1], [0, 0, 1, 1], [], []>} : vector<8x128xf32>, vector<128x128xf32>, vector<8x128xf32> -> vector<8x128xf32>
    %13 = vector.broadcast %1 : vector<1x128xf32> to vector<8x128xf32>
    %14 = arith.addf %12, %13 : vector<8x128xf32>
    %cst_10 = arith.constant 0.000000e+00 : f32
    %15 = vector.broadcast %cst_10 : f32 to vector<8x128xf32>
    %16 = arith.maximumf %14, %15 : vector<8x128xf32>
    %c160 = arith.constant 160 : index
    %c0_11 = arith.constant 0 : index
    %17 = vector.load %arg2[%c160, %c0_11] : memref<424x128xf32, #tpu.memory_space<vmem>>, vector<128x128xf32>
    %cst_12 = arith.constant dense<0.000000e+00> : vector<8x128xf32>
    %18 = tpu.matmul %16, %17, %cst_12 {dimension_numbers = #tpu.dot_dimension_numbers<[1], [0], [0], [1], [0, 0, 1, 1], [], []>} : vector<8x128xf32>, vector<128x128xf32>, vector<8x128xf32> -> vector<8x128xf32>
    %19 = vector.broadcast %2 : vector<1x128xf32> to vector<8x128xf32>
    %20 = arith.addf %18, %19 : vector<8x128xf32>
    %cst_13 = arith.constant 0.000000e+00 : f32
    %21 = vector.broadcast %cst_13 : f32 to vector<8x128xf32>
    %22 = arith.maximumf %20, %21 : vector<8x128xf32>
    %c288 = arith.constant 288 : index
    %c0_14 = arith.constant 0 : index
    %23 = vector.load %arg2[%c288, %c0_14] : memref<424x128xf32, #tpu.memory_space<vmem>>, vector<128x128xf32>
    %cst_15 = arith.constant dense<0.000000e+00> : vector<8x128xf32>
    %24 = tpu.matmul %22, %23, %cst_15 {dimension_numbers = #tpu.dot_dimension_numbers<[1], [0], [0], [1], [0, 0, 1, 1], [], []>} : vector<8x128xf32>, vector<128x128xf32>, vector<8x128xf32> -> vector<8x128xf32>
    %25 = vector.broadcast %3 : vector<1x128xf32> to vector<8x128xf32>
    %26 = arith.addf %24, %25 : vector<8x128xf32>
    %27 = vector.extract_strided_slice %26 {offsets = [0, 0], sizes = [8, 1], strides = [1, 1]} : vector<8x128xf32> to vector<8x1xf32>
    %c0_16 = arith.constant 0 : index
    %c0_17 = arith.constant 0 : index
    %28 = vector.load %arg3[%c0_16, %c0_17] : memref<8x1xf32, #tpu.memory_space<vmem>>, vector<8x1xf32>
    tpu.vector_store %arg3[%c0_16, %c0_17], %27 {strides = array<i32>} : memref<8x1xf32, #tpu.memory_space<vmem>>, vector<8x1xf32>,
    return
  }
  func.func @transform_0(%arg0: i32) -> (i32, i32) {
    %c0_i32 = arith.constant 0 : i32
    %c0_i32_0 = arith.constant 0 : i32
    return %arg0, %c0_i32 : i32, i32
  }
  func.func @transform_1(%arg0: i32) -> (i32, i32) {
    %c0_i32 = arith.constant 0 : i32
    %c0_i32_0 = arith.constant 0 : i32
    %c0_i32_1 = arith.constant 0 : i32
    return %c0_i32, %c0_i32_0 : i32, i32
  }
  func.func @transform_2(%arg0: i32) -> (i32, i32) {
    %c0_i32 = arith.constant 0 : i32
    %c0_i32_0 = arith.constant 0 : i32
    return %arg0, %c0_i32 : i32, i32
  }
}

</mosaic_0001>

<llo_original>
// kernel: tpu_custom_call.1
$region0: #{tpu_custom_call.1}
  #allocation0 [shape = 'u32[]', space=smem, size = 0x4, offset = 0x4, fixed_abs, tag = 'smem constant byte address 0x4 - core index']
  #allocation1 [shape = 'u32[144,128]{1,0:T(1,128)}', space=vmem, size = 0x12000, scoped, tag = 'internal scratch']
  %s0 = inlined_call_operand.hbm [shape: f32[8,32], index: 0, kind: input, shape index: {}]
  %s1 = inlined_call_operand.hbm [shape: f32[424,128], index: 1, kind: input, shape index: {}]
  %s2 = inlined_call_operand.vmem [shape: f32[8,1], index: 2, kind: output, shape index: {}]
  %s3 = sld [smem:[#allocation0]]
  $region26: #{tpu_custom_call.1} parent=0
    _
  %s5 = ssub.s32 1, %s3
  %s6 = scalar_select 0, %s5, %s3
  $region1: #{tpu_custom_call.1} parent=0
    #allocation2 [shape = 'u8[4096]{0}', space=vmem, size = 0x1000, scoped, tag = 'input window, operand 0, single buffered']
    #allocation3 [shape = 's32[1]{0}', space=sflag, size = 0x4, scoped, tag = 'scoped memory for tpu_custom_call.1']
    #allocation4 [shape = 'u8[217088]{0}', space=vmem, size = 0x35000, scoped, tag = 'input window, operand 1, single buffered']
    #allocation5 [shape = 's32[1]{0}', space=sflag, size = 0x4, scoped, tag = 'scoped memory for tpu_custom_call.1']
    %7 = vsyncpa [#allocation3], 0
    %8 = vsyncpa [#allocation5], 0
    // Predicated region
    $region2: #{tpu_custom_call.1} parent=1 // pred_check
      _
    $region3: #{tpu_custom_call.1} parent=1 // pred_check_branch
      %10 = sbr.rel (0) target = $region5
    $region4: #{tpu_custom_call.1} parent=1 // pred_region
      %s12 = ssub.s32 128, 128
      %13 = vsyncadd [#allocation3], %s12
      %s15 = sshll.u32 [#allocation2], 4
      %s16 = int_to_ptr.vmem [resolvable:$true] %s15
      %18 = dma.hbm_to_vmem [thread:$0]  %s0, 128, %s16, [#allocation3]
    $region5: #{tpu_custom_call.1} parent=1 // pred_fallthru
      _
    // Predicated region
    $region6: #{tpu_custom_call.1} parent=1 // pred_check
      _
    $region7: #{tpu_custom_call.1} parent=1 // pred_check_branch
      %20 = sbr.rel (0) target = $region9
    $region8: #{tpu_custom_call.1} parent=1 // pred_region
      %s22 = ssub.s32 6784, 6784
      %23 = vsyncadd [#allocation5], %s22
      %s24 = sshll.u32 [#allocation4], 4
      %s25 = int_to_ptr.vmem [resolvable:$true] %s24
      %30 = dma.hbm_to_vmem [thread:$0]  %s1, 6784, %s25, [#allocation5], 128, 128, 8
    $region9: #{tpu_custom_call.1} parent=1 // pred_fallthru
      _
    // Predicated region
    $region10: #{tpu_custom_call.1} parent=1 // pred_check
      _
    $region11: #{tpu_custom_call.1} parent=1 // pred_check_branch
      %32 = sbr.rel (0) target = $region13
    $region12: #{tpu_custom_call.1} parent=1 // pred_region
      %33 = dma.done [#allocation3], 128
    $region13: #{tpu_custom_call.1} parent=1 // pred_fallthru
      _
    // Predicated region
    $region14: #{tpu_custom_call.1} parent=1 // pred_check
      _
    $region15: #{tpu_custom_call.1} parent=1 // pred_check_branch
      %35 = sbr.rel (0) target = $region17
    $region16: #{tpu_custom_call.1} parent=1 // pred_region
      %36 = dma.done [#allocation5], 6784
    $region17: #{tpu_custom_call.1} parent=1 // pred_fallthru
      _
    %v37 = vld [vmem:[#allocation4 + $0x1a0] sm:$0x1]
    %v38 = vld [vmem:[#allocation4 + $0x1a1] sm:$0x1]
    %v39 = vld [vmem:[#allocation4 + $0x1a2] sm:$0x1]
    %v40 = vld [vmem:[#allocation4 + $0x1a3] sm:$0x1]
    %v41 = vld [vmem:[#allocation2] sm:$0xff]
    %v42 = vld [vmem:[#allocation4] sm:$0xff]
    %v43 = vld [vmem:[#allocation4 + $0x8] sm:$0xff]
    %v44 = vld [vmem:[#allocation4 + $0x10] sm:$0xff]
    %v45 = vld [vmem:[#allocation4 + $0x18] sm:$0xff]
    %v46 = vlaneseq
    %v47 = vshrl.u32 %v46, 7
    %v48 = vsub.s32 0, %v47
    %v49 = vrot.slane %v37, %v48
    %vm50 = vcmask 261120
    %v52 = vsel %vm50, %v41, 0
    %54 = vmatprep.subr.mxu0 0.0
    %55 = vmatpush1.msra.mxu0 %v42
    %56 = vmatprep.subr.mxu0 0.0
    %57 = vmatpush1.msra.mxu0 %v43
    %58 = vmatprep.subr.mxu0 0.0
    %59 = vmatpush1.msra.mxu0 %v44
    %60 = vmatprep.subr.mxu0 0.0
    %61 = vmatpush1.msra.mxu0 %v45
    %62 = vmatprep.subr.mxu0 0.0
    %63 = vmatpush1.msra.mxu0 0.0
    %64 = vmatprep.subr.mxu0 0.0
    %65 = vmatpush1.msra.mxu0 0.0
    %66 = vmatprep.subr.mxu0 0.0
    %67 = vmatpush1.msra.mxu0 0.0
    %68 = vmatprep.subr.mxu0 0.0
    %69 = vmatpush1.msra.mxu0 0.0
    %70 = vmatprep.subr.mxu0 0.0
    %71 = vmatpush1.msra.mxu0 0.0
    %72 = vmatprep.subr.mxu0 0.0
    %73 = vmatpush1.msra.mxu0 0.0
    %74 = vmatprep.subr.mxu0 0.0
    %75 = vmatpush1.msra.mxu0 0.0
    %76 = vmatprep.subr.mxu0 0.0
    %77 = vmatpush1.msra.mxu0 0.0
    %78 = vmatprep.subr.mxu0 0.0
    %79 = vmatpush1.msra.mxu0 0.0
    %80 = vmatprep.subr.mxu0 0.0
    %81 = vmatpush1.msra.mxu0 0.0
    %82 = vmatprep.subr.mxu0 0.0
    %83 = vmatpush1.msra.mxu0 0.0
    %84 = vmatprep.subr.mxu0 0.0
    %85 = vmatpush1.msra.mxu0 0.0
    %86 = vmatprep.subr.mxu0 0.0
    %87 = vmatpush1.msra.mxu0 0.0
    %88 = vmatprep.subr.mxu0 0.0
    %89 = vmatpush1.msra.mxu0 0.0
    %90 = vmatprep.subr.mxu0 0.0
    %91 = vmatpush1.msra.mxu0 0.0
    %92 = vmatprep.subr.mxu0 0.0
    %93 = vmatpush1.msra.mxu0 0.0
    %94 = vmatprep.subr.mxu0 0.0
    %95 = vmatpush1.msra.mxu0 0.0
    %96 = vmatprep.subr.mxu0 0.0
    %97 = vmatpush1.msra.mxu0 0.0
    %98 = vmatprep.subr.mxu0 0.0
    %99 = vmatpush1.msra.mxu0 0.0
    %100 = vmatprep.subr.mxu0 0.0
    %101 = vmatpush1.msra.mxu0 0.0
    %102 = vmatprep.subr.mxu0 0.0
    %103 = vmatpush1.msra.mxu0 0.0
    %104 = vmatprep.subr.mxu0 0.0
    %105 = vmatpush1.msra.mxu0 0.0
    %106 = vmatprep.subr.mxu0 0.0
    %107 = vmatpush1.msra.mxu0 0.0
    %108 = vmatprep.subr.mxu0 0.0
    %109 = vmatpush1.msra.mxu0 0.0
    %110 = vmatprep.subr.mxu0 0.0
    %111 = vmatpush1.msra.mxu0 0.0
    %112 = vmatprep.subr.mxu0 0.0
    %113 = vmatpush1.msra.mxu0 0.0
    %114 = vmatprep.subr.mxu0 0.0
    %115 = vmatpush1.msra.mxu0 0.0
    %116 = vmatprep.subr.mxu0 0.0
    %117 = vmatpush1.msra.mxu0 0.0
    %118 = vmatprep.mubr.f32.mxu0 0.0
    %119 = vmatmul.mubr.f32.gmra.mrb[0].mxu0 %v52
    %v120 = vpop.f32.mrb[0].mxu0
    %v121 = vadd.f32 %v49, %v120
    %v122 = vpop.f32.mrb[0].mxu0
    %123 = vdwg.mxu0
    %v124 = vmax.f32 %v121, 0.0
    %v125 = vld [vmem:[#allocation4 + $0x20] sm:$0xff]
    %v126 = vld [vmem:[#allocation4 + $0x28] sm:$0xff]
    %v127 = vld [vmem:[#allocation4 + $0x30] sm:$0xff]
    %v128 = vld [vmem:[#allocation4 + $0x38] sm:$0xff]
    %v129 = vld [vmem:[#allocation4 + $0x40] sm:$0xff]
    %v130 = vld [vmem:[#allocation4 + $0x48] sm:$0xff]
    %v131 = vld [vmem:[#allocation4 + $0x50] sm:$0xff]
    %v132 = vld [vmem:[#allocation4 + $0x58] sm:$0xff]
    %v133 = vld [vmem:[#allocation4 + $0x60] sm:$0xff]
    %v134 = vld [vmem:[#allocation4 + $0x68] sm:$0xff]
    %v135 = vld [vmem:[#allocation4 + $0x70] sm:$0xff]
    %v136 = vld [vmem:[#allocation4 + $0x78] sm:$0xff]
    %v137 = vld [vmem:[#allocation4 + $0x80] sm:$0xff]
    %v138 = vld [vmem:[#allocation4 + $0x88] sm:$0xff]
    %v139 = vld [vmem:[#allocation4 + $0x90] sm:$0xff]
    %v140 = vld [vmem:[#allocation4 + $0x98] sm:$0xff]
    %v141 = vlaneseq
    %v142 = vshrl.u32 %v141, 7
    %v143 = vsub.s32 0, %v142
    %v144 = vrot.slane %v38, %v143
    %145 = vmatprep.subr.mxu0 0.0
    %146 = vmatpush1.msra.mxu0 %v125
    %147 = vmatprep.subr.mxu0 0.0
    %148 = vmatpush1.msra.mxu0 %v126
    %149 = vmatprep.subr.mxu0 0.0
    %150 = vmatpush1.msra.mxu0 %v127
    %151 = vmatprep.subr.mxu0 0.0
    %152 = vmatpush1.msra.mxu0 %v128
    %153 = vmatprep.subr.mxu0 0.0
    %154 = vmatpush1.msra.mxu0 %v129
    %155 = vmatprep.subr.mxu0 0.0
    %156 = vmatpush1.msra.mxu0 %v130
    %157 = vmatprep.subr.mxu0 0.0
    %158 = vmatpush1.msra.mxu0 %v131
    %159 = vmatprep.subr.mxu0 0.0
    %160 = vmatpush1.msra.mxu0 %v132
    %161 = vmatprep.subr.mxu0 0.0
    %162 = vmatpush1.msra.mxu0 %v133
    %163 = vmatprep.subr.mxu0 0.0
    %164 = vmatpush1.msra.mxu0 %v134
    %165 = vmatprep.subr.mxu0 0.0
    %166 = vmatpush1.msra.mxu0 %v135
    %167 = vmatprep.subr.mxu0 0.0
    %168 = vmatpush1.msra.mxu0 %v136
    %169 = vmatprep.subr.mxu0 0.0
    %170 = vmatpush1.msra.mxu0 %v137
    %171 = vmatprep.subr.mxu0 0.0
    %172 = vmatpush1.msra.mxu0 %v138
    %173 = vmatprep.subr.mxu0 0.0
    %174 = vmatpush1.msra.mxu0 %v139
    %175 = vmatprep.subr.mxu0 0.0
    %176 = vmatpush1.msra.mxu0 %v140
    %177 = vmatprep.subr.mxu0 0.0
    %178 = vmatpush1.msra.mxu0 0.0
    %179 = vmatprep.subr.mxu0 0.0
    %180 = vmatpush1.msra.mxu0 0.0
    %181 = vmatprep.subr.mxu0 0.0
    %182 = vmatpush1.msra.mxu0 0.0
    %183 = vmatprep.subr.mxu0 0.0
    %184 = vmatpush1.msra.mxu0 0.0
    %185 = vmatprep.subr.mxu0 0.0
    %186 = vmatpush1.msra.mxu0 0.0
    %187 = vmatprep.subr.mxu0 0.0
    %188 = vmatpush1.msra.mxu0 0.0
    %189 = vmatprep.subr.mxu0 0.0
    %190 = vmatpush1.msra.mxu0 0.0
    %191 = vmatprep.subr.mxu0 0.0
    %192 = vmatpush1.msra.mxu0 0.0
    %193 = vmatprep.subr.mxu0 0.0
    %194 = vmatpush1.msra.mxu0 0.0
    %195 = vmatprep.subr.mxu0 0.0
    %196 = vmatpush1.msra.mxu0 0.0
    %197 = vmatprep.subr.mxu0 0.0
    %198 = vmatpush1.msra.mxu0 0.0
    %199 = vmatprep.subr.mxu0 0.0
    %200 = vmatpush1.msra.mxu0 0.0
    %201 = vmatprep.subr.mxu0 0.0
    %202 = vmatpush1.msra.mxu0 0.0
    %203 = vmatprep.subr.mxu0 0.0
    %204 = vmatpush1.msra.mxu0 0.0
    %205 = vmatprep.subr.mxu0 0.0
    %206 = vmatpush1.msra.mxu0 0.0
    %207 = vmatprep.subr.mxu0 0.0
    %208 = vmatpush1.msra.mxu0 0.0
    %209 = vmatprep.mubr.f32.mxu0 0.0
    %210 = vmatmul.mubr.f32.gmra.mrb[0].mxu0 %v124
    %v211 = vpop.f32.mrb[0].mxu0
    %v212 = vadd.f32 %v144, %v211
    %v213 = vpop.f32.mrb[0].mxu0
    %214 = vdwg.mxu0
    %v215 = vmax.f32 %v212, 0.0
    %v216 = vld [vmem:[#allocation4 + $0xa0] sm:$0xff]
    %v217 = vld [vmem:[#allocation4 + $0xa8] sm:$0xff]
    %v218 = vld [vmem:[#allocation4 + $0xb0] sm:$0xff]
    %v219 = vld [vmem:[#allocation4 + $0xb8] sm:$0xff]
    %v220 = vld [vmem:[#allocation4 + $0xc0] sm:$0xff]
    %v221 = vld [vmem:[#allocation4 + $0xc8] sm:$0xff]
    %v222 = vld [vmem:[#allocation4 + $0xd0] sm:$0xff]
    %v223 = vld [vmem:[#allocation4 + $0xd8] sm:$0xff]
    %v224 = vld [vmem:[#allocation4 + $0xe0] sm:$0xff]
    %v225 = vld [vmem:[#allocation4 + $0xe8] sm:$0xff]
    %v226 = vld [vmem:[#allocation4 + $0xf0] sm:$0xff]
    %v227 = vld [vmem:[#allocation4 + $0xf8] sm:$0xff]
    %v228 = vld [vmem:[#allocation4 + $0x100] sm:$0xff]
    %v229 = vld [vmem:[#allocation4 + $0x108] sm:$0xff]
    %v230 = vld [vmem:[#allocation4 + $0x110] sm:$0xff]
    %v231 = vld [vmem:[#allocation4 + $0x118] sm:$0xff]
    %v232 = vlaneseq
    %v233 = vshrl.u32 %v232, 7
    %v234 = vsub.s32 0, %v233
    %v235 = vrot.slane %v39, %v234
    %236 = vmatprep.subr.mxu0 0.0
    %237 = vmatpush1.msra.mxu0 %v216
    %238 = vmatprep.subr.mxu0 0.0
    %239 = vmatpush1.msra.mxu0 %v217
    %240 = vmatprep.subr.mxu0 0.0
    %241 = vmatpush1.msra.mxu0 %v218
    %242 = vmatprep.subr.mxu0 0.0
    %243 = vmatpush1.msra.mxu0 %v219
    %244 = vmatprep.subr.mxu0 0.0
    %245 = vmatpush1.msra.mxu0 %v220
    %246 = vmatprep.subr.mxu0 0.0
    %247 = vmatpush1.msra.mxu0 %v221
    %248 = vmatprep.subr.mxu0 0.0
    %249 = vmatpush1.msra.mxu0 %v222
    %250 = vmatprep.subr.mxu0 0.0
    %251 = vmatpush1.msra.mxu0 %v223
    %252 = vmatprep.subr.mxu0 0.0
    %253 = vmatpush1.msra.mxu0 %v224
    %254 = vmatprep.subr.mxu0 0.0
    %255 = vmatpush1.msra.mxu0 %v225
    %256 = vmatprep.subr.mxu0 0.0
    %257 = vmatpush1.msra.mxu0 %v226
    %258 = vmatprep.subr.mxu0 0.0
    %259 = vmatpush1.msra.mxu0 %v227
    %260 = vmatprep.subr.mxu0 0.0
    %261 = vmatpush1.msra.mxu0 %v228
    %262 = vmatprep.subr.mxu0 0.0
    %263 = vmatpush1.msra.mxu0 %v229
    %264 = vmatprep.subr.mxu0 0.0
    %265 = vmatpush1.msra.mxu0 %v230
    %266 = vmatprep.subr.mxu0 0.0
    %267 = vmatpush1.msra.mxu0 %v231
    %268 = vmatprep.subr.mxu0 0.0
    %269 = vmatpush1.msra.mxu0 0.0
    %270 = vmatprep.subr.mxu0 0.0
    %271 = vmatpush1.msra.mxu0 0.0
    %272 = vmatprep.subr.mxu0 0.0
    %273 = vmatpush1.msra.mxu0 0.0
    %274 = vmatprep.subr.mxu0 0.0
    %275 = vmatpush1.msra.mxu0 0.0
    %276 = vmatprep.subr.mxu0 0.0
    %277 = vmatpush1.msra.mxu0 0.0
    %278 = vmatprep.subr.mxu0 0.0
    %279 = vmatpush1.msra.mxu0 0.0
    %280 = vmatprep.subr.mxu0 0.0
    %281 = vmatpush1.msra.mxu0 0.0
    %282 = vmatprep.subr.mxu0 0.0
    %283 = vmatpush1.msra.mxu0 0.0
    %284 = vmatprep.subr.mxu0 0.0
    %285 = vmatpush1.msra.mxu0 0.0
    %286 = vmatprep.subr.mxu0 0.0
    %287 = vmatpush1.msra.mxu0 0.0
    %288 = vmatprep.subr.mxu0 0.0
    %289 = vmatpush1.msra.mxu0 0.0
    %290 = vmatprep.subr.mxu0 0.0
    %291 = vmatpush1.msra.mxu0 0.0
    %292 = vmatprep.subr.mxu0 0.0
    %293 = vmatpush1.msra.mxu0 0.0
    %294 = vmatprep.subr.mxu0 0.0
    %295 = vmatpush1.msra.mxu0 0.0
    %296 = vmatprep.subr.mxu0 0.0
    %297 = vmatpush1.msra.mxu0 0.0
    %298 = vmatprep.subr.mxu0 0.0
    %299 = vmatpush1.msra.mxu0 0.0
    %300 = vmatprep.mubr.f32.mxu0 0.0
    %301 = vmatmul.mubr.f32.gmra.mrb[0].mxu0 %v215
    %v302 = vpop.f32.mrb[0].mxu0
    %v303 = vadd.f32 %v235, %v302
    %v304 = vpop.f32.mrb[0].mxu0
    %305 = vdwg.mxu0
    %v306 = vmax.f32 %v303, 0.0
    %v307 = vld [vmem:[#allocation4 + $0x120] sm:$0xff]
    %v308 = vld [vmem:[#allocation4 + $0x128] sm:$0xff]
    %v309 = vld [vmem:[#allocation4 + $0x130] sm:$0xff]
    %v310 = vld [vmem:[#allocation4 + $0x138] sm:$0xff]
    %v311 = vld [vmem:[#allocation4 + $0x140] sm:$0xff]
    %v312 = vld [vmem:[#allocation4 + $0x148] sm:$0xff]
    %v313 = vld [vmem:[#allocation4 + $0x150] sm:$0xff]
    %v314 = vld [vmem:[#allocation4 + $0x158] sm:$0xff]
    %v315 = vld [vmem:[#allocation4 + $0x160] sm:$0xff]
    %v316 = vld [vmem:[#allocation4 + $0x168] sm:$0xff]
    %v317 = vld [vmem:[#allocation4 + $0x170] sm:$0xff]
    %v318 = vld [vmem:[#allocation4 + $0x178] sm:$0xff]
    %v319 = vld [vmem:[#allocation4 + $0x180] sm:$0xff]
    %v320 = vld [vmem:[#allocation4 + $0x188] sm:$0xff]
    %v321 = vld [vmem:[#allocation4 + $0x190] sm:$0xff]
    %v322 = vld [vmem:[#allocation4 + $0x198] sm:$0xff]
    %v323 = vlaneseq
    %v324 = vshrl.u32 %v323, 7
    %v325 = vsub.s32 0, %v324
    %v326 = vrot.slane %v40, %v325
    %327 = vmatprep.subr.mxu0 0.0
    %328 = vmatpush1.msra.mxu0 %v307
    %329 = vmatprep.subr.mxu0 0.0
    %330 = vmatpush1.msra.mxu0 %v308
    %331 = vmatprep.subr.mxu0 0.0
    %332 = vmatpush1.msra.mxu0 %v309
    %333 = vmatprep.subr.mxu0 0.0
    %334 = vmatpush1.msra.mxu0 %v310
    %335 = vmatprep.subr.mxu0 0.0
    %336 = vmatpush1.msra.mxu0 %v311
    %337 = vmatprep.subr.mxu0 0.0
    %338 = vmatpush1.msra.mxu0 %v312
    %339 = vmatprep.subr.mxu0 0.0
    %340 = vmatpush1.msra.mxu0 %v313
    %341 = vmatprep.subr.mxu0 0.0
    %342 = vmatpush1.msra.mxu0 %v314
    %343 = vmatprep.subr.mxu0 0.0
    %344 = vmatpush1.msra.mxu0 %v315
    %345 = vmatprep.subr.mxu0 0.0
    %346 = vmatpush1.msra.mxu0 %v316
    %347 = vmatprep.subr.mxu0 0.0
    %348 = vmatpush1.msra.mxu0 %v317
    %349 = vmatprep.subr.mxu0 0.0
    %350 = vmatpush1.msra.mxu0 %v318
    %351 = vmatprep.subr.mxu0 0.0
    %352 = vmatpush1.msra.mxu0 %v319
    %353 = vmatprep.subr.mxu0 0.0
    %354 = vmatpush1.msra.mxu0 %v320
    %355 = vmatprep.subr.mxu0 0.0
    %356 = vmatpush1.msra.mxu0 %v321
    %357 = vmatprep.subr.mxu0 0.0
    %358 = vmatpush1.msra.mxu0 %v322
    %359 = vmatprep.subr.mxu0 0.0
    %360 = vmatpush1.msra.mxu0 0.0
    %361 = vmatprep.subr.mxu0 0.0
    %362 = vmatpush1.msra.mxu0 0.0
    %363 = vmatprep.subr.mxu0 0.0
    %364 = vmatpush1.msra.mxu0 0.0
    %365 = vmatprep.subr.mxu0 0.0
    %366 = vmatpush1.msra.mxu0 0.0
    %367 = vmatprep.subr.mxu0 0.0
    %368 = vmatpush1.msra.mxu0 0.0
    %369 = vmatprep.subr.mxu0 0.0
    %370 = vmatpush1.msra.mxu0 0.0
    %371 = vmatprep.subr.mxu0 0.0
    %372 = vmatpush1.msra.mxu0 0.0
    %373 = vmatprep.subr.mxu0 0.0
    %374 = vmatpush1.msra.mxu0 0.0
    %375 = vmatprep.subr.mxu0 0.0
    %376 = vmatpush1.msra.mxu0 0.0
    %377 = vmatprep.subr.mxu0 0.0
    %378 = vmatpush1.msra.mxu0 0.0
    %379 = vmatprep.subr.mxu0 0.0
    %380 = vmatpush1.msra.mxu0 0.0
    %381 = vmatprep.subr.mxu0 0.0
    %382 = vmatpush1.msra.mxu0 0.0
    %383 = vmatprep.subr.mxu0 0.0
    %384 = vmatpush1.msra.mxu0 0.0
    %385 = vmatprep.subr.mxu0 0.0
    %386 = vmatpush1.msra.mxu0 0.0
    %387 = vmatprep.subr.mxu0 0.0
    %388 = vmatpush1.msra.mxu0 0.0
    %389 = vmatprep.subr.mxu0 0.0
    %390 = vmatpush1.msra.mxu0 0.0
    %391 = vmatprep.mubr.f32.mxu0 0.0
    %392 = vmatmul.mubr.f32.gmra.mrb[0].mxu0 %v306
    %v393 = vpop.f32.mrb[0].mxu0
    %v394 = vadd.f32 %v326, %v393
    %v395 = vpop.f32.mrb[0].mxu0
    %396 = vdwg.mxu0
    %vm397 = vcmask 7168
    %398 = vst.msk [vmem:[%s2] sm:$0xff] %vm397, %v394
    // Predicated region
    $region18: #{tpu_custom_call.1} parent=1 // pred_check
      _
    $region19: #{tpu_custom_call.1} parent=1 // pred_check_branch
      %400 = sbr.rel (0) target = $region21
    $region20: #{tpu_custom_call.1} parent=1 // pred_region
      _
    $region21: #{tpu_custom_call.1} parent=1 // pred_fallthru
      _
    // Predicated region
    $region22: #{tpu_custom_call.1} parent=1 // pred_check
      _
    $region23: #{tpu_custom_call.1} parent=1 // pred_check_branch
      %402 = sbr.rel (0) target = $region25
    $region24: #{tpu_custom_call.1} parent=1 // pred_region
      _
    $region25: #{tpu_custom_call.1} parent=1 // pred_fallthru
      _
    %403 = vsyncpa [#allocation3], 1
    %404 = vsyncpa [#allocation5], 1

</llo_original>
